<compile_context>
chip_gen: v6e
topology: v6e:2x2x1
jax: 0.10.0
libtpu: 0.0.40
codegen_flags: <defaults>
</compile_context>

<pallas_src>
import functools

import jax
import jax.numpy as jnp
import numpy as np
from jax.experimental import pallas as pl
from jax.experimental.pallas import tpu as pltpu


def _pose_consistency_kernel(s_aug_ref, l_aug_ref, l_norm2_ref, out_ref, min_ref, *,
                             num_landmarks, max_distance_sq):
    """Grid axis 0 tiles the splat dimension (reduction).

    s_aug_ref   : [TILE_N, 8]  VMEM  (x, y, z, ||s||^2, 0, 0, 0, 0)
    l_aug_ref   : [8, M_pad]   VMEM  (-2*lx, -2*ly, -2*lz, 1, 0, 0, 0, 0) per lane
    l_norm2_ref : [1, M_pad]   VMEM  ||l_cam||^2 per lane (0 on padded lanes)
    out_ref     : [1, 4]       SMEM  (sum_d2, sum_d, count, pad)
    min_ref     : [1, M_pad]   VMEM scratch, running min of (||s||^2 - 2 s.l)
    """
    i = pl.program_id(0)

    @pl.when(i == 0)
    def _():
        min_ref[...] = jnp.full_like(min_ref, jnp.inf)

    # MXU: d2_partial[n, m] = ||s_n||^2 - 2 * s_n . l_m      [TILE_N, M_pad]
    d2_partial = jnp.dot(s_aug_ref[...], l_aug_ref[...],
                         preferred_element_type=jnp.float32)
    tile_min = jnp.min(d2_partial, axis=0, keepdims=True)    # [1, M_pad] (XLU)
    min_ref[...] = jnp.minimum(min_ref[...], tile_min)

    @pl.when(i == pl.num_programs(0) - 1)
    def _():
        m_pad = min_ref.shape[1]
        # ||l||^2 is constant over splats, so adding it after the min is exact.
        # Clamp: the cancellation form can produce tiny negative values.
        min_d2 = jnp.maximum(min_ref[...] + l_norm2_ref[...], 0.0)   # [1, M_pad]

        lane = jax.lax.broadcasted_iota(jnp.int32, (1, m_pad), 1)
        valid = (lane < num_landmarks) & (min_d2 < max_distance_sq)
        vf = valid.astype(jnp.float32)

        masked_d2 = jnp.where(valid, min_d2, 0.0)
        masked_d = jnp.sqrt(masked_d2)           # single masked sqrt at finalize

        out_ref[0, 0] = jnp.sum(masked_d2)       # sum of squared nearest distances
        out_ref[0, 1] = jnp.sum(masked_d)        # sum of nearest distances
        out_ref[0, 2] = jnp.sum(vf)              # number of valid matches
        out_ref[0, 3] = jnp.float32(0.0)         # padding slot


def pose_consistency_loss(splat_positions, camera_pose, landmarks_3d,
                          landmarks_2d, camera_intrinsics, *,
                          loss_type='l2', max_distance=1.0, landmark_weight=1.0):
    """JAX/Pallas equivalent of PoseConsistencyLoss.forward (loss_type='l2')."""
    del landmarks_2d, camera_intrinsics  # unused by the reference forward pass

    if loss_type != 'l2':
        # TODO(synk): 'l1'/'huber' need per-coordinate gather of the argmin splat; only the default 'l2' path is implemented in-kernel.
        raise NotImplementedError("only loss_type='l2' is implemented")

    n = int(splat_positions.shape[0])
    m = int(landmarks_3d.shape[0])
    if m == 0:
        # Matches the PyTorch module's early-return (no 'mean_distance' key).
        return jnp.float32(0.0), {'num_matches': 0}

    splat = splat_positions.astype(jnp.float32)
    pose = camera_pose.astype(jnp.float32)
    lm = landmarks_3d.astype(jnp.float32)

    # --- hoisted landmark transform (tiny 4x4 @ [4, M], done once in XLA) ---
    hom = jnp.concatenate([lm, jnp.ones((m, 1), jnp.float32)], axis=1)   # [M, 4]
    lcam = (pose @ hom.T)[:3, :]                                          # [3, M]

    m_pad = max(128, ((m + 127) // 128) * 128)

    # Augmented landmark operand: rows 0..2 = -2*lcam, row 3 = 1, rows 4..7 = 0.
    l_aug = jnp.zeros((8, m_pad), jnp.float32)
    l_aug = l_aug.at[0:3, :m].set(-2.0 * lcam)
    l_aug = l_aug.at[3, :m].set(1.0)
    l_norm2 = jnp.zeros((1, m_pad), jnp.float32).at[0, :m].set(
        jnp.sum(lcam * lcam, axis=0))

    # --- splat tiling: big tiles amortize per-step overhead, but the
    # [TILE_N, M_pad] d2 block stays small everywhere (2048*128*4B = 1 MiB),
    # well under the v7x 64 MiB / 32 MiB-scoped VMEM budget.
    # TODO(synk): for very large M, add a second ("parallel") grid axis over landmark tiles.
    tile_n = min(2048, max(8, ((n + 7) // 8) * 8))
    n_pad = ((n + tile_n - 1) // tile_n) * tile_n
    grid_n = n_pad // tile_n

    # Augmented splat operand: cols 0..2 = xyz, col 3 = ||s||^2 (1e30 on padded
    # rows so they lose the min without huge cross-terms), cols 4..7 = 0.
    s_aug = jnp.zeros((n_pad, 8), jnp.float32)
    s_aug = s_aug.at[:n, 0:3].set(splat)
    s_norm2 = jnp.sum(splat * splat, axis=1)
    col3 = jnp.full((n_pad,), 1e30, jnp.float32).at[:n].set(s_norm2)
    s_aug = s_aug.at[:, 3].set(col3)

    kernel = functools.partial(_pose_consistency_kernel,
                               num_landmarks=m,
                               max_distance_sq=float(max_distance) ** 2)

    sums = pl.pallas_call(
        kernel,
        out_shape=jax.ShapeDtypeStruct((1, 4), jnp.float32),
        grid=(grid_n,),
        in_specs=[
            pl.BlockSpec((tile_n, 8), lambda i: (i, 0)),      # splat tiles (pipelined)
            pl.BlockSpec((8, m_pad), lambda i: (0, 0)),       # landmarks (resident)
            pl.BlockSpec((1, m_pad), lambda i: (0, 0)),       # ||l||^2   (resident)
        ],
        out_specs=pl.BlockSpec((1, 4), lambda i: (0, 0),
                               memory_space=pltpu.MemorySpace.SMEM),
        scratch_shapes=[pltpu.VMEM((1, m_pad), jnp.float32)],  # running min
        compiler_params=pltpu.CompilerParams(
            dimension_semantics=("arbitrary",)),
    )(s_aug, l_aug, l_norm2)

    sum_sq, sum_d, count = sums[0, 0], sums[0, 1], sums[0, 2]
    safe_count = jnp.maximum(count, 1.0)

    position_loss = sum_sq / (3.0 * safe_count)          # F.mse_loss over [K, 3] elements
    total_loss = jnp.where(count > 0.0,
                           jnp.float32(landmark_weight) * position_loss,
                           jnp.float32(0.0))
    mean_distance = jnp.where(count > 0.0, sum_d / safe_count, jnp.float32(0.0))

    info = {'num_matches': count.astype(jnp.int32), 'mean_distance': mean_distance}
    return total_loss, info


def _reference_loss(splat, pose, lm3d, max_distance=1.0, landmark_weight=1.0):
    """Pure-JAX mirror of the PyTorch forward (for correctness check)."""
    hom = jnp.concatenate([lm3d, jnp.ones((lm3d.shape[0], 1), lm3d.dtype)], axis=1)
    lcam = (pose @ hom.T).T[:, :3]
    d = jnp.sqrt(jnp.sum((splat[:, None, :] - lcam[None, :, :]) ** 2, axis=-1))
    nearest = jnp.argmin(d, axis=0)
    mind = d[nearest, jnp.arange(lcam.shape[0])]
    mask = mind < max_distance
    diffsq = jnp.sum((splat[nearest] - lcam) ** 2, axis=1)
    count = jnp.sum(mask.astype(jnp.float32))
    loss = jnp.where(
        count > 0,
        landmark_weight * jnp.sum(jnp.where(mask, diffsq, 0.0)) / (3.0 * jnp.maximum(count, 1.0)),
        0.0)
    meand = jnp.where(count > 0, jnp.sum(jnp.where(mask, mind, 0.0)) / jnp.maximum(count, 1.0), 0.0)
    return loss, count, meand


if __name__ == "__main__":
    key = jax.random.PRNGKey(0)
    k1, k2, k3 = jax.random.split(key, 3)

    N, M = 37, 20
    splat_positions = jax.random.uniform(k1, (N, 3), jnp.float32, -1.0, 1.0)
    landmarks_3d = jax.random.uniform(k2, (M, 3), jnp.float32, -1.0, 1.0)
    landmarks_2d = jax.random.uniform(k3, (M, 2), jnp.float32, 0.0, 256.0)  # unused
    camera_pose = jnp.eye(4, dtype=jnp.float32).at[:3, 3].set(
        jnp.array([0.10, -0.05, 0.20], jnp.float32))
    camera_intrinsics = jnp.array([[128.0, 0.0, 128.0],
                                   [0.0, 128.0, 128.0],
                                   [0.0, 0.0, 1.0]], jnp.float32)  # unused

    loss, info = pose_consistency_loss(
        splat_positions, camera_pose, landmarks_3d, landmarks_2d, camera_intrinsics,
        loss_type='l2', max_distance=1.0, landmark_weight=1.0)
    loss = jax.block_until_ready(loss)
    info = jax.block_until_ready(info)

    ref_loss, ref_count, ref_meand = _reference_loss(
        splat_positions, camera_pose, landmarks_3d, max_distance=1.0, landmark_weight=1.0)
    np.testing.assert_allclose(np.asarray(loss), np.asarray(ref_loss), rtol=1e-3, atol=1e-5)
    np.testing.assert_allclose(np.asarray(info['num_matches'], dtype=np.float32),
                               np.asarray(ref_count), rtol=0, atol=0.5)
    np.testing.assert_allclose(np.asarray(info['mean_distance']),
                               np.asarray(ref_meand), rtol=1e-3, atol=1e-5)

    print("KERNEL_OK")
</pallas_src>

<mosaic_0001>
module attributes {stable_mosaic.version = 11 : i64} {
  func.func @_pose_consistency_kernel(%arg0: i32, %arg1: memref<40x8xf32, #tpu.memory_space<vmem>>, %arg2: memref<8x128xf32, #tpu.memory_space<vmem>>, %arg3: memref<1x128xf32, #tpu.memory_space<vmem>>, %arg4: memref<1x4xf32, #tpu.memory_space<smem>>, %arg5: memref<1x128xf32, #tpu.memory_space<vmem>>) attributes {dimension_semantics = [#tpu.dimension_semantics<arbitrary>], iteration_bounds = array<i64: 1>, scalar_prefetch = 0 : i64, scratch_operands = 1 : i64, tpu.core_type = #tpu.core_type<tc>, window_params = [{transform_indices = @transform_0, window_bounds = array<i64: 40, 8>}, {pipeline_mode = #tpu.pipeline_mode<synchronous>, transform_indices = @transform_1, window_bounds = array<i64: 8, 128>}, {pipeline_mode = #tpu.pipeline_mode<synchronous>, transform_indices = @transform_2, window_bounds = array<i64: 1, 128>}, {transform_indices = @transform_3, window_bounds = array<i64: 1, 4>}]} {
    %c0_i32 = arith.constant 0 : i32
    %0 = arith.cmpi eq, %arg0, %c0_i32 : i32
    %1 = arith.extui %0 : i1 to i32
    %c0_i32_0 = arith.constant 0 : i32
    %2 = arith.cmpi ne, %1, %c0_i32_0 : i32
    scf.if %2 {
      %cst_11 = arith.constant 0x7F800000 : f32
      %14 = vector.broadcast %cst_11 : f32 to vector<1x128xf32>
      %c0_12 = arith.constant 0 : index
      %c0_13 = arith.constant 0 : index
      %15 = vector.load %arg5[%c0_12, %c0_13] : memref<1x128xf32, #tpu.memory_space<vmem>>, vector<1x128xf32>
      tpu.vector_store %arg5[%c0_12, %c0_13], %14 {strides = array<i32>} : memref<1x128xf32, #tpu.memory_space<vmem>>, vector<1x128xf32>,
    } else {
    }
    %c0 = arith.constant 0 : index
    %c0_1 = arith.constant 0 : index
    %3 = vector.load %arg1[%c0, %c0_1] : memref<40x8xf32, #tpu.memory_space<vmem>>, vector<40x8xf32>
    %c0_2 = arith.constant 0 : index
    %c0_3 = arith.constant 0 : index
    %4 = vector.load %arg2[%c0_2, %c0_3] : memref<8x128xf32, #tpu.memory_space<vmem>>, vector<8x128xf32>
    %cst = arith.constant dense<0.000000e+00> : vector<40x128xf32>
    %5 = tpu.matmul %3, %4, %cst {dimension_numbers = #tpu.dot_dimension_numbers<[1], [0], [0], [1], [0, 0, 1, 1], [], []>} : vector<40x8xf32>, vector<8x128xf32>, vector<40x128xf32> -> vector<40x128xf32>
    %cst_4 = arith.constant dense<0x7F800000> : vector<128xf32>
    %6 = vector.multi_reduction <minimumf>, %5, %cst_4 [0] : vector<40x128xf32> to vector<128xf32>
    %7 = vector.shape_cast %6 : vector<128xf32> to vector<1x128xf32>
    %c0_5 = arith.constant 0 : index
    %c0_6 = arith.constant 0 : index
    %8 = vector.load %arg5[%c0_5, %c0_6] : memref<1x128xf32, #tpu.memory_space<vmem>>, vector<1x128xf32>
    %9 = arith.minimumf %8, %7 : vector<1x128xf32>
    %c0_7 = arith.constant 0 : index
    %c0_8 = arith.constant 0 : index
    %10 = vector.load %arg5[%c0_7, %c0_8] : memref<1x128xf32, #tpu.memory_space<vmem>>, vector<1x128xf32>
    tpu.vector_store %arg5[%c0_7, %c0_8], %9 {strides = array<i32>} : memref<1x128xf32, #tpu.memory_space<vmem>>, vector<1x128xf32>,
    %c0_i32_9 = arith.constant 0 : i32
    %11 = arith.cmpi eq, %arg0, %c0_i32_9 : i32
    %12 = arith.extui %11 : i1 to i32
    %c0_i32_10 = arith.constant 0 : i32
    %13 = arith.cmpi ne, %12, %c0_i32_10 : i32
    scf.if %13 {
      %c0_11 = arith.constant 0 : index
      %c0_12 = arith.constant 0 : index
      %14 = vector.load %arg5[%c0_11, %c0_12] : memref<1x128xf32, #tpu.memory_space<vmem>>, vector<1x128xf32>
      %c0_13 = arith.constant 0 : index
      %c0_14 = arith.constant 0 : index
      %15 = vector.load %arg3[%c0_13, %c0_14] : memref<1x128xf32, #tpu.memory_space<vmem>>, vector<1x128xf32>
      %16 = arith.addf %14, %15 : vector<1x128xf32>
      %cst_15 = arith.constant 0.000000e+00 : f32
      %17 = vector.broadcast %cst_15 : f32 to vector<1x128xf32>
      %18 = arith.maximumf %16, %17 : vector<1x128xf32>
      %19 = tpu.iota {dimensions = array<i32: 1>} : vector<1x128xi32>
      %c20_i32 = arith.constant 20 : i32
      %20 = vector.broadcast %c20_i32 : i32 to vector<1x128xi32>
      %21 = arith.cmpi slt, %19, %20 : vector<1x128xi32>
      %cst_16 = arith.constant 1.000000e+00 : f32
      %22 = vector.broadcast %cst_16 : f32 to vector<1x128xf32>
      %23 = arith.cmpf olt, %18, %22 : vector<1x128xf32>
      %24 = arith.andi %21, %23 : vector<1x128xi1>
      %25 = arith.extui %24 : vector<1x128xi1> to vector<1x128xi32>
      %26 = arith.sitofp %25 : vector<1x128xi32> to vector<1x128xf32>
      %cst_17 = arith.constant 0.000000e+00 : f32
      %27 = vector.broadcast %cst_17 : f32 to vector<1x128xf32>
      %28 = arith.select %24, %18, %27 : vector<1x128xi1>, vector<1x128xf32>
      %29 = math.sqrt %28 : vector<1x128xf32>
      %30 = vector.shape_cast %28 : vector<1x128xf32> to vector<1x1x128xf32>
      %cst_18 = arith.constant dense<0.000000e+00> : vector<1xf32>
      %31 = vector.multi_reduction <add>, %30, %cst_18 [1, 2] : vector<1x1x128xf32> to vector<1xf32>
      %32 = vector.shape_cast %31 : vector<1xf32> to vector<1x1x1xf32>
      %33 = vector.extract %32[0, 0, 0] : f32 from vector<1x1x1xf32>
      %c0_19 = arith.constant 0 : index
      %c0_20 = arith.constant 0 : index
      %34 = memref.load %arg4[%c0_19, %c0_20] : memref<1x4xf32, #tpu.memory_space<smem>>
      memref.store %33, %arg4[%c0_19, %c0_20] : memref<1x4xf32, #tpu.memory_space<smem>>
      %35 = vector.shape_cast %29 : vector<1x128xf32> to vector<1x1x128xf32>
      %cst_21 = arith.constant dense<0.000000e+00> : vector<1xf32>
      %36 = vector.multi_reduction <add>, %35, %cst_21 [1, 2] : vector<1x1x128xf32> to vector<1xf32>
      %37 = vector.shape_cast %36 : vector<1xf32> to vector<1x1x1xf32>
      %38 = vector.extract %37[0, 0, 0] : f32 from vector<1x1x1xf32>
      %c0_22 = arith.constant 0 : index
      %c1 = arith.constant 1 : index
      %39 = memref.load %arg4[%c0_22, %c1] : memref<1x4xf32, #tpu.memory_space<smem>>
      memref.store %38, %arg4[%c0_22, %c1] : memref<1x4xf32, #tpu.memory_space<smem>>
      %40 = vector.shape_cast %26 : vector<1x128xf32> to vector<1x1x128xf32>
      %cst_23 = arith.constant dense<0.000000e+00> : vector<1xf32>
      %41 = vector.multi_reduction <add>, %40, %cst_23 [1, 2] : vector<1x1x128xf32> to vector<1xf32>
      %42 = vector.shape_cast %41 : vector<1xf32> to vector<1x1x1xf32>
      %43 = vector.extract %42[0, 0, 0] : f32 from vector<1x1x1xf32>
      %c0_24 = arith.constant 0 : index
      %c2 = arith.constant 2 : index
      %44 = memref.load %arg4[%c0_24, %c2] : memref<1x4xf32, #tpu.memory_space<smem>>
      memref.store %43, %arg4[%c0_24, %c2] : memref<1x4xf32, #tpu.memory_space<smem>>
      %cst_25 = arith.constant 0.000000e+00 : f32
      %c0_26 = arith.constant 0 : index
      %c3 = arith.constant 3 : index
      %45 = memref.load %arg4[%c0_26, %c3] : memref<1x4xf32, #tpu.memory_space<smem>>
      memref.store %cst_25, %arg4[%c0_26, %c3] : memref<1x4xf32, #tpu.memory_space<smem>>
    } else {
    }
    return
  }
  func.func @transform_0(%arg0: i32) -> (i32, i32) {
    %c0_i32 = arith.constant 0 : i32
    %c0_i32_0 = arith.constant 0 : i32
    return %arg0, %c0_i32 : i32, i32
  }
  func.func @transform_1(%arg0: i32) -> (i32, i32) {
    %c0_i32 = arith.constant 0 : i32
    %c0_i32_0 = arith.constant 0 : i32
    %c0_i32_1 = arith.constant 0 : i32
    return %c0_i32, %c0_i32_0 : i32, i32
  }
  func.func @transform_2(%arg0: i32) -> (i32, i32) {
    %c0_i32 = arith.constant 0 : i32
    %c0_i32_0 = arith.constant 0 : i32
    %c0_i32_1 = arith.constant 0 : i32
    return %c0_i32, %c0_i32_0 : i32, i32
  }
  func.func @transform_3(%arg0: i32) -> (i32, i32) {
    %c0_i32 = arith.constant 0 : i32
    %c0_i32_0 = arith.constant 0 : i32
    %c0_i32_1 = arith.constant 0 : i32
    return %c0_i32, %c0_i32_0 : i32, i32
  }
}

</mosaic_0001>

<llo_original>
// kernel: tpu_custom_call.1
$region0: #{tpu_custom_call.1}
  #allocation0 [shape = 'u32[]', space=smem, size = 0x4, offset = 0x4, fixed_abs, tag = 'smem constant byte address 0x4 - core index']
  #allocation1 [shape = 'u32[144,128]{1,0:T(1,128)}', space=vmem, size = 0x12000, scoped, tag = 'internal scratch']
  #allocation2 [shape = 'f32[1,128]{1,0:T(1,128)}', space=vmem, size = 0x200, scoped, tag = 'scratch operand']
  %s0 = inlined_call_operand.vmem [shape: f32[40,8], index: 0, kind: input, shape index: {}]
  %s1 = inlined_call_operand.vmem [shape: f32[8,128], index: 1, kind: input, shape index: {}]
  %s2 = inlined_call_operand.vmem [shape: f32[1,128], index: 2, kind: input, shape index: {}]
  %s3 = inlined_call_operand.hbm [shape: f32[1,4], index: 3, kind: output, shape index: {}]
  %s4 = sld [smem:[#allocation0]]
  $region30: #{tpu_custom_call.1} parent=0
    _
  %s6 = ssub.s32 1, %s4
  %s7 = scalar_select 0, %s6, %s4
  $region1: #{tpu_custom_call.1} parent=0
    #allocation3 [shape = 'u8[512]{0}', space=smem, size = 0x200, scoped, tag = 'output window, operand 0, single buffered']
    #allocation4 [shape = 's32[1]{0}', space=sflag, size = 0x4, scoped, tag = 'scoped memory for tpu_custom_call.1']
    %8 = vsyncpa [#allocation4], 0
    // Predicated region
    $region2: #{tpu_custom_call.1} parent=1 // pred_check
      _
    $region3: #{tpu_custom_call.1} parent=1 // pred_check_branch
      %10 = sbr.rel (0) target = $region5
    $region4: #{tpu_custom_call.1} parent=1 // pred_region
      _
    $region5: #{tpu_custom_call.1} parent=1 // pred_fallthru
      _
    // Predicated region
    $region6: #{tpu_custom_call.1} parent=1 // pred_check
      _
    $region7: #{tpu_custom_call.1} parent=1 // pred_check_branch
      %12 = sbr.rel (0) target = $region9
    $region8: #{tpu_custom_call.1} parent=1 // pred_region
      _
    $region9: #{tpu_custom_call.1} parent=1 // pred_fallthru
      _
    // Predicated region
    $region10: #{tpu_custom_call.1} parent=1 // pred_check
      _
    $region11: #{tpu_custom_call.1} parent=1 // pred_check_branch
      %14 = sbr.rel (0) target = $region13
    $region12: #{tpu_custom_call.1} parent=1 // pred_region
      _
    $region13: #{tpu_custom_call.1} parent=1 // pred_fallthru
      _
    %p15 = scmp.eq.s32.totalorder 0, 0
    // Predicated region
    $region14: #{tpu_custom_call.1} parent=1 // pred_check
      %p16 = pneg %p15
    $region15: #{tpu_custom_call.1} parent=1 // pred_check_branch
      %18 = sbr.rel (%p16) target = $region17
    $region16: #{tpu_custom_call.1} parent=1 // pred_region
      %19 = vst [vmem:[#allocation2] sm:$0x1] inf
    $region17: #{tpu_custom_call.1} parent=1 // pred_fallthru
      _
    %v20 = vld [vmem:[%s0] sm:$0xff]
    %v21 = vld [vmem:[%s0 + $0x8] sm:$0xff]
    %v22 = vld [vmem:[%s0 + $0x10] sm:$0xff]
    %v23 = vld [vmem:[%s0 + $0x18] sm:$0xff]
    %v24 = vld [vmem:[%s0 + $0x20] sm:$0xff]
    %v25 = vld [vmem:[%s1] sm:$0xff]
    %vm26 = vcmask 64512
    %v28 = vsel %vm26, %v20, 0
    %v31 = vsel %vm26, %v21, 0
    %v34 = vsel %vm26, %v22, 0
    %v37 = vsel %vm26, %v23, 0
    %v40 = vsel %vm26, %v24, 0
    %42 = vmatprep.subr.mxu0 0.0
    %43 = vmatpush1.msra.mxu0 0.0
    %44 = vmatprep.subr.mxu0 0.0
    %45 = vmatpush1.msra.mxu0 0.0
    %46 = vmatprep.subr.mxu0 0.0
    %47 = vmatpush1.msra.mxu0 0.0
    %48 = vmatprep.subr.mxu0 0.0
    %49 = vmatpush1.msra.mxu0 0.0
    %50 = vmatprep.subr.mxu0 0.0
    %51 = vmatpush1.msra.mxu0 0.0
    %52 = vmatprep.subr.mxu0 0.0
    %53 = vmatpush1.msra.mxu0 0.0
    %54 = vmatprep.subr.mxu0 0.0
    %55 = vmatpush1.msra.mxu0 0.0
    %56 = vmatprep.subr.mxu0 0.0
    %57 = vmatpush1.msra.mxu0 0.0
    %58 = vmatprep.subr.mxu0 0.0
    %59 = vmatpush1.msra.mxu0 0.0
    %60 = vmatprep.subr.mxu0 0.0
    %61 = vmatpush1.msra.mxu0 0.0
    %62 = vmatprep.subr.mxu0 0.0
    %63 = vmatpush1.msra.mxu0 0.0
    %64 = vmatprep.subr.mxu0 0.0
    %65 = vmatpush1.msra.mxu0 0.0
    %66 = vmatprep.subr.mxu0 0.0
    %67 = vmatpush1.msra.mxu0 0.0
    %68 = vmatprep.subr.mxu0 0.0
    %69 = vmatpush1.msra.mxu0 0.0
    %70 = vmatprep.subr.mxu0 0.0
    %71 = vmatpush1.msra.mxu0 0.0
    %72 = vmatprep.subr.mxu0 0.0
    %73 = vmatpush1.msra.mxu0 %v25
    %74 = vmatprep.subr.mxu0 0.0
    %75 = vmatpush2.msra.mxu0 0.0
    %76 = vmatprep.subr.mxu0 0.0
    %77 = vmatpush2.msra.mxu0 0.0
    %78 = vmatprep.subr.mxu0 0.0
    %79 = vmatpush2.msra.mxu0 0.0
    %80 = vmatprep.subr.mxu0 0.0
    %81 = vmatpush2.msra.mxu0 0.0
    %82 = vmatprep.subr.mxu0 0.0
    %83 = vmatpush2.msra.mxu0 0.0
    %84 = vmatprep.subr.mxu0 0.0
    %85 = vmatpush2.msra.mxu0 0.0
    %86 = vmatprep.subr.mxu0 0.0
    %87 = vmatpush2.msra.mxu0 0.0
    %88 = vmatprep.subr.mxu0 0.0
    %89 = vmatpush2.msra.mxu0 0.0
    %90 = vmatprep.subr.mxu0 0.0
    %91 = vmatpush2.msra.mxu0 0.0
    %92 = vmatprep.subr.mxu0 0.0
    %93 = vmatpush2.msra.mxu0 0.0
    %94 = vmatprep.subr.mxu0 0.0
    %95 = vmatpush2.msra.mxu0 0.0
    %96 = vmatprep.subr.mxu0 0.0
    %97 = vmatpush2.msra.mxu0 0.0
    %98 = vmatprep.subr.mxu0 0.0
    %99 = vmatpush2.msra.mxu0 0.0
    %100 = vmatprep.subr.mxu0 0.0
    %101 = vmatpush2.msra.mxu0 0.0
    %102 = vmatprep.subr.mxu0 0.0
    %103 = vmatpush2.msra.mxu0 0.0
    %104 = vmatprep.subr.mxu0 0.0
    %105 = vmatpush2.msra.mxu0 0.0
    %106 = vmatprep.mubr.f32.mxu0 0.0
    %107 = vmatmul.mubr.f32.gmra.mxu0 %v28
    %v108 = vpop.f32.mrf.mxu0
    %v109 = vadd.f32 0.0, %v108
    %v110 = vpop.f32.mrf.mxu0
    %111 = vmatprep.mubr.f32.mxu0 0.0
    %112 = vmatmul.mubr.f32.gmra.mxu0 %v31
    %v113 = vpop.f32.mrf.mxu0
    %v114 = vadd.f32 0.0, %v113
    %v115 = vpop.f32.mrf.mxu0
    %116 = vmatprep.mubr.f32.mxu0 0.0
    %117 = vmatmul.mubr.f32.gmra.mxu0 %v34
    %v118 = vpop.f32.mrf.mxu0
    %v119 = vadd.f32 0.0, %v118
    %v120 = vpop.f32.mrf.mxu0
    %121 = vmatprep.mubr.f32.mxu0 0.0
    %122 = vmatmul.mubr.f32.gmra.mxu0 %v37
    %v123 = vpop.f32.mrf.mxu0
    %v124 = vadd.f32 0.0, %v123
    %v125 = vpop.f32.mrf.mxu0
    %126 = vmatprep.mubr.f32.mxu0 0.0
    %127 = vmatmul.mubr.f32.gmra.mxu0 %v40
    %v128 = vpop.f32.mrf.mxu0
    %v129 = vadd.f32 0.0, %v128
    %v130 = vpop.f32.mrf.mxu0
    %131 = vdwg.mxu0
    %v132 = vmin.f32 %v109, %v129
    %v133 = vmin.f32 %v132, %v114
    %v134 = vmin.f32 %v119, %v124
    %v135 = vmin.f32 %v133, %v134
    %v136 = vrot.slane %v135, 4
    %v137 = vmin.f32 %v135, %v136
    %v138 = vrot.slane %v137, 2
    %v139 = vmin.f32 %v137, %v138
    %v140 = vrot.slane %v139, 1
    %v141 = vmin.f32 %v139, %v140
    %v142 = vld [vmem:[#allocation2] sm:$0x1]
    %v143 = vmin.f32 %v142, %v141
    %144 = vst [vmem:[#allocation2] sm:$0x1] %v143
    // Predicated region
    $region18: #{tpu_custom_call.1} parent=1 // pred_check
      %p145 = pneg %p15
    $region19: #{tpu_custom_call.1} parent=1 // pred_check_branch
      %147 = sbr.rel (%p145) target = $region21
    $region20: #{tpu_custom_call.1} parent=1 // pred_region
      %v148 = vld [vmem:[#allocation2] sm:$0x1]
      %v149 = vld [vmem:[%s2] sm:$0x1]
      %v150 = vadd.f32 %v148, %v149
      %v151 = vmax.f32 %v150, 0.0
      %v152 = vlaneseq
      %v153 = vand.u32 %v152, 127
      %vm154 = vcmp.lt.s32.totalorder %v153, 20
      %vm155 = vcmp.lt.f32.partialorder %v151, 1.0
      %vm156 = vmand %vm154, %vm155
      %v157 = vsel %vm156, 1, 0
      %v158 = vcvt.s32.f32 %v157
      %v159 = vsel %vm156, %v151, 0.0
      %v160 = vrsqrt.pop %v159
      %v161 = vmul.f32 %v159, %v160
      %vm162 = vcmp.eq.f32.partialorder %v159, inf
      %v163 = vsel %vm162, %v159, %v161
      %vm164 = vcmp.eq.f32.partialorder %v159, 0.0
      %v165 = vand.u32 %v159, 2147483648
      %v166 = vsel %vm164, %v165, %v163
      %vm167 = vcmask 1040384
      %v168 = vsel %vm167, %v159, 0.0
      %169 = vadd.xlane.f32.xlu0 %v168
      %v170 = vpop.xlane.xlu0 %169
      %v171 = vrot.slane %v170, 4
      %v172 = vadd.f32 %v170, %v171
      %v173 = vrot.slane %v172, 2
      %v174 = vadd.f32 %v172, %v173
      %v175 = vrot.slane %v174, 1
      %v176 = vadd.f32 %v174, %v175
      %s177 = vtos %v176
      %s178 = scalar_lea.smem [#allocation3], 0
      %179 = sst [smem:[%s178]] %s177
      %v180 = vsel %vm167, %v166, 0.0
      %181 = vadd.xlane.f32.xlu0 %v180
      %v182 = vpop.xlane.xlu0 %181
      %v183 = vrot.slane %v182, 4
      %v184 = vadd.f32 %v182, %v183
      %v185 = vrot.slane %v184, 2
      %v186 = vadd.f32 %v184, %v185
      %v187 = vrot.slane %v186, 1
      %v188 = vadd.f32 %v186, %v187
      %s189 = vtos %v188
      %s190 = scalar_lea.smem [#allocation3], 1
      %191 = sst [smem:[%s190]] %s189
      %v192 = vsel %vm167, %v158, 0.0
      %193 = vadd.xlane.f32.xlu0 %v192
      %v194 = vpop.xlane.xlu0 %193
      %v195 = vrot.slane %v194, 4
      %v196 = vadd.f32 %v194, %v195
      %v197 = vrot.slane %v196, 2
      %v198 = vadd.f32 %v196, %v197
      %v199 = vrot.slane %v198, 1
      %v200 = vadd.f32 %v198, %v199
      %s201 = vtos %v200
      %s202 = scalar_lea.smem [#allocation3], 2
      %203 = sst [smem:[%s202]] %s201
      %s204 = scalar_lea.smem [#allocation3], 3
      %205 = sst [smem:[%s204]] 0.0
    $region21: #{tpu_custom_call.1} parent=1 // pred_fallthru
      _
    // Predicated region
    $region22: #{tpu_custom_call.1} parent=1 // pred_check
      _
    $region23: #{tpu_custom_call.1} parent=1 // pred_check_branch
      %207 = sbr.rel (0) target = $region25
    $region24: #{tpu_custom_call.1} parent=1 // pred_region
      %s209 = ssub.s32 16, 16
      %210 = vsyncadd [#allocation4], %s209
      %213 = dma.smem_to_hbm [#allocation3], 16, %s3, [#allocation4]
    $region25: #{tpu_custom_call.1} parent=1 // pred_fallthru
      _
    // Predicated region
    $region26: #{tpu_custom_call.1} parent=1 // pred_check
      _
    $region27: #{tpu_custom_call.1} parent=1 // pred_check_branch
      %215 = sbr.rel (0) target = $region29
    $region28: #{tpu_custom_call.1} parent=1 // pred_region
      %216 = dma.done [#allocation4], 16
    $region29: #{tpu_custom_call.1} parent=1 // pred_fallthru
      _
    %217 = sfence
    %218 = vsyncpa [#allocation4], 1

</llo_original>
